<compile_context>
chip_gen: v7x
topology: tpu7x:2x2x1
jax: 0.10.0
libtpu: 0.0.40
codegen_flags: <defaults>
</compile_context>

<pallas_src>
import functools
import math

import jax
import jax.numpy as jnp
from jax.experimental import pallas as pl
from jax.experimental.pallas import tpu as pltpu

LANE = 128        # TPU lane width; output features padded up to this for dense stores.
NEG_FILL = -1e30  # value for padded action lanes (never selectable by argmax).


def mlp_kernel(x_ref,
               w1_ref, b1_ref,
               w2_ref, b2_ref,
               w3_ref, b3_ref,
               w4_ref, b4_ref,
               out_ref):
    # bf16 operands on the MXU, f32 accumulation, f32 biases.
    x = x_ref[...].astype(jnp.bfloat16)        # fused f32->bf16 cast (no wrapper pass)

    h = jnp.dot(x, w1_ref[...], preferred_element_type=jnp.float32) + b1_ref[...]
    h = jnp.maximum(h, 0.0).astype(jnp.bfloat16)

    h = jnp.dot(h, w2_ref[...], preferred_element_type=jnp.float32) + b2_ref[...]
    h = jnp.maximum(h, 0.0).astype(jnp.bfloat16)

    h = jnp.dot(h, w3_ref[...], preferred_element_type=jnp.float32) + b3_ref[...]
    h = jnp.maximum(h, 0.0).astype(jnp.bfloat16)

    out_ref[...] = (jnp.dot(h, w4_ref[...], preferred_element_type=jnp.float32)
                    + b4_ref[...]).astype(out_ref.dtype)   # bf16 store, full 128 lanes


def prepare_params(params):
    """One-time prep (hoisted out of the per-step call path):
    bf16 weights, f32 biases, layer-4 padded to 128 output lanes."""
    (w1, b1), (w2, b2), (w3, b3), (w4, b4) = params
    action_size = w4.shape[1]
    n_pad = pl.cdiv(action_size, LANE) * LANE
    pad = n_pad - action_size
    w4p = jnp.pad(w4, ((0, 0), (0, pad))).astype(jnp.bfloat16)
    b4p = jnp.pad(b4.astype(jnp.float32), ((0, 0), (0, pad)),
                  constant_values=NEG_FILL)
    prepared = (w1.astype(jnp.bfloat16), b1.astype(jnp.float32),
                w2.astype(jnp.bfloat16), b2.astype(jnp.float32),
                w3.astype(jnp.bfloat16), b3.astype(jnp.float32),
                w4p, b4p)
    return prepared, action_size


@functools.partial(jax.jit, static_argnames=("action_size", "grid_steps"))
def dqn_forward(state, prepared, *, action_size, grid_steps=2):
    """Fused DQN forward.  state: [B, state_size] f32 -> [B, action_size] f32.

    grid_steps: number of batch tiles.  2 (default) keeps both v7x TensorCores
    busy; 1 is optimal on single-TC v5e/v6e for batches up to a few thousand.
    """
    w1, b1, w2, b2, w3, b3, w4, b4 = prepared
    B, state_size = state.shape
    hidden = w1.shape[1]
    n_pad = w4.shape[1]

    # Batch tiling: as few grid steps as requested, tile rounded to 8 sublanes.
    steps = max(1, min(int(grid_steps), pl.cdiv(B, 8)))
    tb = pl.cdiv(pl.cdiv(B, steps), 8) * 8
    bp = tb * steps
    x = state if bp == B else jnp.pad(state, ((0, bp - B), (0, 0)))

    def resident(arr):
        # Constant index_map -> block fetched once, VMEM-resident across the grid.
        return pl.BlockSpec(arr.shape, lambda i: (0, 0))

    flops = 2 * bp * (state_size * hidden
                      + hidden * w2.shape[1]
                      + w3.shape[0] * hidden
                      + hidden * n_pad)
    bytes_accessed = (int(x.size) * x.dtype.itemsize
                      + sum(int(a.size) * a.dtype.itemsize for a in prepared)
                      + bp * n_pad * 2)  # bf16 output slab

    out = pl.pallas_call(
        mlp_kernel,
        out_shape=jax.ShapeDtypeStruct((bp, n_pad), jnp.bfloat16),
        grid=(steps,),
        in_specs=[
            pl.BlockSpec((tb, state_size), lambda i: (i, 0)),
            resident(w1), resident(b1),
            resident(w2), resident(b2),
            resident(w3), resident(b3),
            resident(w4), resident(b4),
        ],
        out_specs=pl.BlockSpec((tb, n_pad), lambda i: (i, 0)),
        compiler_params=pltpu.CompilerParams(
            dimension_semantics=("parallel",)),  # v7x: shard batch tiles across 2 TCs
        cost_estimate=pl.CostEstimate(
            flops=flops, transcendentals=0, bytes_accessed=int(bytes_accessed)),
    )(x, w1, b1, w2, b2, w3, b3, w4, b4)

    # Drop batch/lane padding; return f32 to match the torch module's output dtype.
    return out[:B, :action_size].astype(jnp.float32)


def init_params(key, state_size, action_size, hidden=128):
    """Mirror torch.nn.Linear's default U(-1/sqrt(fan_in), 1/sqrt(fan_in)) init
    (distribution/shapes match; RNG values differ from torch)."""
    dims = [state_size, hidden, hidden * 2, hidden, action_size]
    params = []
    for i in range(4):
        fan_in, fan_out = dims[i], dims[i + 1]
        key, kw, kb = jax.random.split(key, 3)
        bound = 1.0 / math.sqrt(fan_in)
        w = jax.random.uniform(kw, (fan_in, fan_out), jnp.float32,
                               minval=-bound, maxval=bound)
        b = jax.random.uniform(kb, (1, fan_out), jnp.float32,
                               minval=-bound, maxval=bound)
        params.append((w, b))
    return params


def reference_forward(state, params, quantize_bf16=False):
    """Pure-JAX reference. quantize_bf16=True mimics the kernel's numerics
    (bf16 operands, f32 accumulation, f32 biases)."""
    cast = (lambda a: a.astype(jnp.bfloat16)) if quantize_bf16 else (lambda a: a)
    h = state
    for i, (w, b) in enumerate(params):
        h = jnp.dot(cast(h), cast(w), preferred_element_type=jnp.float32) + b
        if i < 3:
            h = jnp.maximum(h, 0.0)
    return h


if __name__ == "__main__":
    # hidden=128 matches the module default; B=256 -> 2 grid steps of 128 rows.
    B = 256
    state_size = 8
    action_size = 4
    hidden = 128

    key = jax.random.PRNGKey(0)
    key, kx = jax.random.split(key)
    state = jax.random.normal(kx, (B, state_size), jnp.float32)
    params = init_params(key, state_size, action_size, hidden)

    # One-time weight prep (bf16 cast + lane padding) hoisted out of the call path.
    prepared, act = prepare_params(params)

    out = dqn_forward(state, prepared, action_size=act, grid_steps=2)
    out = jax.block_until_ready(out)
    assert out.shape == (B, action_size)

    # Check vs. a bf16-quantized reference (same operand numerics as the kernel;
    # the kernel additionally rounds the final store to bf16).
    ref_bf16 = reference_forward(state, params, quantize_bf16=True)
    assert jnp.allclose(out, ref_bf16, atol=2e-2, rtol=2e-2)

    # Semantic check vs. the full-f32 reference (matches the torch module).
    ref_f32 = reference_forward(state, params, quantize_bf16=False)
    assert jnp.allclose(out, ref_f32, atol=5e-2, rtol=5e-2)

    print("KERNEL_OK")
</pallas_src>

<mosaic_0001>
module attributes {stable_mosaic.version = 11 : i64} {
  func.func @mlp_kernel(%arg0: i32, %arg1: memref<128x8xf32, #tpu.memory_space<vmem>>, %arg2: memref<8x128xbf16, #tpu.memory_space<vmem>>, %arg3: memref<1x128xf32, #tpu.memory_space<vmem>>, %arg4: memref<128x256xbf16, #tpu.memory_space<vmem>>, %arg5: memref<1x256xf32, #tpu.memory_space<vmem>>, %arg6: memref<256x128xbf16, #tpu.memory_space<vmem>>, %arg7: memref<1x128xf32, #tpu.memory_space<vmem>>, %arg8: memref<128x128xbf16, #tpu.memory_space<vmem>>, %arg9: memref<1x128xf32, #tpu.memory_space<vmem>>, %arg10: memref<128x128xbf16, #tpu.memory_space<vmem>>) attributes {dimension_semantics = [#tpu.dimension_semantics<parallel>], iteration_bounds = array<i64: 2>, scalar_prefetch = 0 : i64, scratch_operands = 0 : i64, tpu.core_type = #tpu.core_type<tc>, window_params = [{transform_indices = @transform_0, window_bounds = array<i64: 128, 8>}, {pipeline_mode = #tpu.pipeline_mode<synchronous>, transform_indices = @transform_1, window_bounds = array<i64: 8, 128>}, {pipeline_mode = #tpu.pipeline_mode<synchronous>, transform_indices = @transform_2, window_bounds = array<i64: 1, 128>}, {pipeline_mode = #tpu.pipeline_mode<synchronous>, transform_indices = @transform_3, window_bounds = array<i64: 128, 256>}, {pipeline_mode = #tpu.pipeline_mode<synchronous>, transform_indices = @transform_4, window_bounds = array<i64: 1, 256>}, {pipeline_mode = #tpu.pipeline_mode<synchronous>, transform_indices = @transform_5, window_bounds = array<i64: 256, 128>}, {pipeline_mode = #tpu.pipeline_mode<synchronous>, transform_indices = @transform_6, window_bounds = array<i64: 1, 128>}, {pipeline_mode = #tpu.pipeline_mode<synchronous>, transform_indices = @transform_7, window_bounds = array<i64: 128, 128>}, {pipeline_mode = #tpu.pipeline_mode<synchronous>, transform_indices = @transform_8, window_bounds = array<i64: 1, 128>}, {transform_indices = @transform_9, window_bounds = array<i64: 128, 128>}]} {
    %c0 = arith.constant 0 : index
    %c0_0 = arith.constant 0 : index
    %0 = vector.load %arg1[%c0, %c0_0] : memref<128x8xf32, #tpu.memory_space<vmem>>, vector<128x8xf32>
    %1 = arith.truncf %0 : vector<128x8xf32> to vector<128x8xbf16>
    %c0_1 = arith.constant 0 : index
    %c0_2 = arith.constant 0 : index
    %2 = vector.load %arg2[%c0_1, %c0_2] : memref<8x128xbf16, #tpu.memory_space<vmem>>, vector<8x128xbf16>
    %cst = arith.constant dense<0.000000e+00> : vector<128x128xf32>
    %3 = tpu.matmul %1, %2, %cst {dimension_numbers = #tpu.dot_dimension_numbers<[1], [0], [0], [1], [0, 0, 1, 1], [], []>} : vector<128x8xbf16>, vector<8x128xbf16>, vector<128x128xf32> -> vector<128x128xf32>
    %c0_3 = arith.constant 0 : index
    %c0_4 = arith.constant 0 : index
    %4 = vector.load %arg3[%c0_3, %c0_4] : memref<1x128xf32, #tpu.memory_space<vmem>>, vector<1x128xf32>
    %5 = vector.broadcast %4 : vector<1x128xf32> to vector<128x128xf32>
    %6 = arith.addf %3, %5 : vector<128x128xf32>
    %cst_5 = arith.constant 0.000000e+00 : f32
    %7 = vector.broadcast %cst_5 : f32 to vector<128x128xf32>
    %8 = arith.maximumf %6, %7 : vector<128x128xf32>
    %9 = arith.truncf %8 : vector<128x128xf32> to vector<128x128xbf16>
    %c0_6 = arith.constant 0 : index
    %c0_7 = arith.constant 0 : index
    %10 = vector.load %arg4[%c0_6, %c0_7] : memref<128x256xbf16, #tpu.memory_space<vmem>>, vector<128x256xbf16>
    %cst_8 = arith.constant dense<0.000000e+00> : vector<128x256xf32>
    %11 = tpu.matmul %9, %10, %cst_8 {dimension_numbers = #tpu.dot_dimension_numbers<[1], [0], [0], [1], [0, 0, 1, 1], [], []>} : vector<128x128xbf16>, vector<128x256xbf16>, vector<128x256xf32> -> vector<128x256xf32>
    %c0_9 = arith.constant 0 : index
    %c0_10 = arith.constant 0 : index
    %12 = vector.load %arg5[%c0_9, %c0_10] : memref<1x256xf32, #tpu.memory_space<vmem>>, vector<1x256xf32>
    %13 = vector.broadcast %12 : vector<1x256xf32> to vector<128x256xf32>
    %14 = arith.addf %11, %13 : vector<128x256xf32>
    %cst_11 = arith.constant 0.000000e+00 : f32
    %15 = vector.broadcast %cst_11 : f32 to vector<128x256xf32>
    %16 = arith.maximumf %14, %15 : vector<128x256xf32>
    %17 = arith.truncf %16 : vector<128x256xf32> to vector<128x256xbf16>
    %c0_12 = arith.constant 0 : index
    %c0_13 = arith.constant 0 : index
    %18 = vector.load %arg6[%c0_12, %c0_13] : memref<256x128xbf16, #tpu.memory_space<vmem>>, vector<256x128xbf16>
    %cst_14 = arith.constant dense<0.000000e+00> : vector<128x128xf32>
    %19 = tpu.matmul %17, %18, %cst_14 {dimension_numbers = #tpu.dot_dimension_numbers<[1], [0], [0], [1], [0, 0, 1, 1], [], []>} : vector<128x256xbf16>, vector<256x128xbf16>, vector<128x128xf32> -> vector<128x128xf32>
    %c0_15 = arith.constant 0 : index
    %c0_16 = arith.constant 0 : index
    %20 = vector.load %arg7[%c0_15, %c0_16] : memref<1x128xf32, #tpu.memory_space<vmem>>, vector<1x128xf32>
    %21 = vector.broadcast %20 : vector<1x128xf32> to vector<128x128xf32>
    %22 = arith.addf %19, %21 : vector<128x128xf32>
    %cst_17 = arith.constant 0.000000e+00 : f32
    %23 = vector.broadcast %cst_17 : f32 to vector<128x128xf32>
    %24 = arith.maximumf %22, %23 : vector<128x128xf32>
    %25 = arith.truncf %24 : vector<128x128xf32> to vector<128x128xbf16>
    %c0_18 = arith.constant 0 : index
    %c0_19 = arith.constant 0 : index
    %26 = vector.load %arg8[%c0_18, %c0_19] : memref<128x128xbf16, #tpu.memory_space<vmem>>, vector<128x128xbf16>
    %cst_20 = arith.constant dense<0.000000e+00> : vector<128x128xf32>
    %27 = tpu.matmul %25, %26, %cst_20 {dimension_numbers = #tpu.dot_dimension_numbers<[1], [0], [0], [1], [0, 0, 1, 1], [], []>} : vector<128x128xbf16>, vector<128x128xbf16>, vector<128x128xf32> -> vector<128x128xf32>
    %c0_21 = arith.constant 0 : index
    %c0_22 = arith.constant 0 : index
    %28 = vector.load %arg9[%c0_21, %c0_22] : memref<1x128xf32, #tpu.memory_space<vmem>>, vector<1x128xf32>
    %29 = vector.broadcast %28 : vector<1x128xf32> to vector<128x128xf32>
    %30 = arith.addf %27, %29 : vector<128x128xf32>
    %31 = arith.truncf %30 : vector<128x128xf32> to vector<128x128xbf16>
    %c0_23 = arith.constant 0 : index
    %c0_24 = arith.constant 0 : index
    %32 = vector.load %arg10[%c0_23, %c0_24] : memref<128x128xbf16, #tpu.memory_space<vmem>>, vector<128x128xbf16>
    tpu.vector_store %arg10[%c0_23, %c0_24], %31 {strides = array<i32>} : memref<128x128xbf16, #tpu.memory_space<vmem>>, vector<128x128xbf16>,
    return
  }
  func.func @transform_0(%arg0: i32) -> (i32, i32) {
    %c0_i32 = arith.constant 0 : i32
    %c0_i32_0 = arith.constant 0 : i32
    return %arg0, %c0_i32 : i32, i32
  }
  func.func @transform_1(%arg0: i32) -> (i32, i32) {
    %c0_i32 = arith.constant 0 : i32
    %c0_i32_0 = arith.constant 0 : i32
    %c0_i32_1 = arith.constant 0 : i32
    return %c0_i32, %c0_i32_0 : i32, i32
  }
  func.func @transform_2(%arg0: i32) -> (i32, i32) {
    %c0_i32 = arith.constant 0 : i32
    %c0_i32_0 = arith.constant 0 : i32
    %c0_i32_1 = arith.constant 0 : i32
    return %c0_i32, %c0_i32_0 : i32, i32
  }
  func.func @transform_3(%arg0: i32) -> (i32, i32) {
    %c0_i32 = arith.constant 0 : i32
    %c0_i32_0 = arith.constant 0 : i32
    %c0_i32_1 = arith.constant 0 : i32
    return %c0_i32, %c0_i32_0 : i32, i32
  }
  func.func @transform_4(%arg0: i32) -> (i32, i32) {
    %c0_i32 = arith.constant 0 : i32
    %c0_i32_0 = arith.constant 0 : i32
    %c0_i32_1 = arith.constant 0 : i32
    return %c0_i32, %c0_i32_0 : i32, i32
  }
  func.func @transform_5(%arg0: i32) -> (i32, i32) {
    %c0_i32 = arith.constant 0 : i32
    %c0_i32_0 = arith.constant 0 : i32
    %c0_i32_1 = arith.constant 0 : i32
    return %c0_i32, %c0_i32_0 : i32, i32
  }
  func.func @transform_6(%arg0: i32) -> (i32, i32) {
    %c0_i32 = arith.constant 0 : i32
    %c0_i32_0 = arith.constant 0 : i32
    %c0_i32_1 = arith.constant 0 : i32
    return %c0_i32, %c0_i32_0 : i32, i32
  }
  func.func @transform_7(%arg0: i32) -> (i32, i32) {
    %c0_i32 = arith.constant 0 : i32
    %c0_i32_0 = arith.constant 0 : i32
    %c0_i32_1 = arith.constant 0 : i32
    return %c0_i32, %c0_i32_0 : i32, i32
  }
  func.func @transform_8(%arg0: i32) -> (i32, i32) {
    %c0_i32 = arith.constant 0 : i32
    %c0_i32_0 = arith.constant 0 : i32
    %c0_i32_1 = arith.constant 0 : i32
    return %c0_i32, %c0_i32_0 : i32, i32
  }
  func.func @transform_9(%arg0: i32) -> (i32, i32) {
    %c0_i32 = arith.constant 0 : i32
    %c0_i32_0 = arith.constant 0 : i32
    return %arg0, %c0_i32 : i32, i32
  }
}

</mosaic_0001>

<llo_original>
// kernel: dqn_forward.1
$region0: #{dqn_forward.1}
  #allocation0 [shape = 'u32[]', space=smem, size = 0x4, offset = 0x4, fixed_abs, tag = 'smem constant byte address 0x4 - core index']
  #allocation1 [shape = 'u32[144,128]{1,0:T(1,128)}', space=vmem, size = 0x12000, scoped, tag = 'internal scratch']
  %s0 = inlined_call_operand.vmem [shape: f32[256,8], index: 0, kind: input, shape index: {}]
  %s1 = inlined_call_operand.vmem [shape: bf16[8,128], index: 1, kind: input, shape index: {}]
  %s2 = inlined_call_operand.vmem [shape: f32[1,128], index: 2, kind: input, shape index: {}]
  %s3 = inlined_call_operand.vmem [shape: bf16[128,256], index: 3, kind: input, shape index: {}]
  %s4 = inlined_call_operand.vmem [shape: f32[1,256], index: 4, kind: input, shape index: {}]
  %s5 = inlined_call_operand.vmem [shape: bf16[256,128], index: 5, kind: input, shape index: {}]
  %s6 = inlined_call_operand.vmem [shape: f32[1,128], index: 6, kind: input, shape index: {}]
  %s7 = inlined_call_operand.hbm [shape: bf16[128,128], index: 7, kind: input, shape index: {}]
  %s8 = inlined_call_operand.vmem [shape: f32[1,128], index: 8, kind: input, shape index: {}]
  %s9 = inlined_call_operand.vmem [shape: bf16[256,128], index: 9, kind: output, shape index: {}]
  %s10 = sld [smem:[#allocation0]]
  $region73: #{dqn_forward.1} parent=0
    _
  %s12 = ssub.s32 1, %s10
  %s13 = scalar_select 0, %s12, %s10
  $region1: #{dqn_forward.1} parent=0
    #allocation2 [shape = 'u8[32768]{0}', space=vmem, size = 0x8000, scoped, tag = 'input window, operand 7, single buffered']
    #allocation3 [shape = 's32[2]{0}', space=sflag, size = 0x8, scoped, tag = 'scoped memory for dqn_forward.1']
    %14 = vsyncpa [#allocation3], 0
    loop: start=0, step=1, limit=4
    $region2: #{dqn_forward.1} parent=1 // loop_pre_header
      _
    $region3: #{dqn_forward.1} parent=1 // loop_header
      %s16 = sphi 0, %s20
      %p17 = scmp.ge.s32.totalorder %s16, 4
      %s26 = sphi 0, %s28
      %s29 = sphi 0, %s26
      %s30 = sphi 0, %s29
      %s46 = sphi 0, %s30
      %s50 = sphi 0, %s50
      %s52 = sphi 0, %s50
      %s53 = sphi 0, %s52
      %s67 = sphi 0, %s53
      %s71 = sphi 0, %s71
      %s73 = sphi 0, %s71
      %s74 = sphi 0, %s73
      %s88 = sphi 0, %s74
      %s92 = sphi 0, %s92
      %s94 = sphi 0, %s92
      %s95 = sphi 0, %s94
      %s109 = sphi 0, %s95
      %s113 = sphi 0, %s113
      %s115 = sphi 0, %s113
      %s116 = sphi 0, %s115
      %s130 = sphi 0, %s116
      %s134 = sphi 0, %s134
      %s136 = sphi 0, %s134
      %s137 = sphi 0, %s136
      %s151 = sphi 0, %s137
      %s155 = sphi 0, %s155
      %s157 = sphi 0, %s155
      %s158 = sphi 0, %s157
      %s172 = sphi 0, %s158
      %s176 = sphi 0, %s176
      %s178 = sphi 0, %s176
      %s179 = sphi 0, %s178
      %s193 = sphi 0, %s179
      %s197 = sphi 0, %s197
      %s199 = sphi 0, %s197
      %s200 = sphi 0, %s199
      %s214 = sphi 0, %s200
      %s220 = sphi 0, %s222
      %s223 = sphi 0, %s220
      %s224 = sphi 0, %s223
      %s240 = sphi 0, %s224
    $region4: #{dqn_forward.1} parent=1 // loop_header_branch
      %19 = sbr.rel (%p17) target = $region8
    $region5: #{dqn_forward.1} parent=1 // loop_body
      %s21 = ssub.s32 %s16, 1
      %s22 = ssub.s32 %s16, 2
      %s23 = sadd.s32 %s16, 1
      %s24 = ssub.s32 %s16, %s23
      %p25 = scmp.eq.s32.totalorder %s24, 0
      %s27 = sadd.s32 %s26, 1
      %s28 = scalar_select %p25, %s26, %s27
      %p31 = pneg %p25
      %p32 = scmp.eq.s32.totalorder %s16, 1
      %p33 = por %p31, %p32
      %p34 = scmp.ne.s32.totalorder %s26, %s29
      %p35 = scmp.eq.s32.totalorder %s16, 0
      %p36 = por %p34, %p35
      %p37 = scmp.ne.s32.totalorder %s26, %s29
      %p38 = scmp.eq.s32.totalorder %s21, 1
      %p39 = por %p37, %p38
      %p40 = scmp.ne.s32.totalorder %s29, %s30
      %p41 = scmp.eq.s32.totalorder %s21, 0
      %p42 = por %p40, %p41
      %p43 = scmp.ne.s32.totalorder %s29, %s30
      %p44 = scmp.eq.s32.totalorder %s22, 1
      %p45 = por %p43, %p44
      %p47 = scmp.ne.s32.totalorder %s30, %s46
      %p48 = scmp.eq.s32.totalorder %s22, 0
      %p49 = por %p47, %p48
      %s51 = sadd.s32 %s50, 1
      %p54 = scmp.eq.s32.totalorder %s16, 1
      %p55 = scmp.ne.s32.totalorder %s50, %s52
      %p56 = scmp.eq.s32.totalorder %s16, 0
      %p57 = por %p55, %p56
      %p58 = scmp.ne.s32.totalorder %s50, %s52
      %p59 = scmp.eq.s32.totalorder %s21, 1
      %p60 = por %p58, %p59
      %p61 = scmp.ne.s32.totalorder %s52, %s53
      %p62 = scmp.eq.s32.totalorder %s21, 0
      %p63 = por %p61, %p62
      %p64 = scmp.ne.s32.totalorder %s52, %s53
      %p65 = scmp.eq.s32.totalorder %s22, 1
      %p66 = por %p64, %p65
      %p68 = scmp.ne.s32.totalorder %s53, %s67
      %p69 = scmp.eq.s32.totalorder %s22, 0
      %p70 = por %p68, %p69
      %s72 = sadd.s32 %s71, 1
      %p75 = scmp.eq.s32.totalorder %s16, 1
      %p76 = scmp.ne.s32.totalorder %s71, %s73
      %p77 = scmp.eq.s32.totalorder %s16, 0
      %p78 = por %p76, %p77
      %p79 = scmp.ne.s32.totalorder %s71, %s73
      %p80 = scmp.eq.s32.totalorder %s21, 1
      %p81 = por %p79, %p80
      %p82 = scmp.ne.s32.totalorder %s73, %s74
      %p83 = scmp.eq.s32.totalorder %s21, 0
      %p84 = por %p82, %p83
      %p85 = scmp.ne.s32.totalorder %s73, %s74
      %p86 = scmp.eq.s32.totalorder %s22, 1
      %p87 = por %p85, %p86
      %p89 = scmp.ne.s32.totalorder %s74, %s88
      %p90 = scmp.eq.s32.totalorder %s22, 0
      %p91 = por %p89, %p90
      %s93 = sadd.s32 %s92, 1
      %p96 = scmp.eq.s32.totalorder %s16, 1
      %p97 = scmp.ne.s32.totalorder %s92, %s94
      %p98 = scmp.eq.s32.totalorder %s16, 0
      %p99 = por %p97, %p98
      %p100 = scmp.ne.s32.totalorder %s92, %s94
      %p101 = scmp.eq.s32.totalorder %s21, 1
      %p102 = por %p100, %p101
      %p103 = scmp.ne.s32.totalorder %s94, %s95
      %p104 = scmp.eq.s32.totalorder %s21, 0
      %p105 = por %p103, %p104
      %p106 = scmp.ne.s32.totalorder %s94, %s95
      %p107 = scmp.eq.s32.totalorder %s22, 1
      %p108 = por %p106, %p107
      %p110 = scmp.ne.s32.totalorder %s95, %s109
      %p111 = scmp.eq.s32.totalorder %s22, 0
      %p112 = por %p110, %p111
      %s114 = sadd.s32 %s113, 1
      %p117 = scmp.eq.s32.totalorder %s16, 1
      %p118 = scmp.ne.s32.totalorder %s113, %s115
      %p119 = scmp.eq.s32.totalorder %s16, 0
      %p120 = por %p118, %p119
      %p121 = scmp.ne.s32.totalorder %s113, %s115
      %p122 = scmp.eq.s32.totalorder %s21, 1
      %p123 = por %p121, %p122
      %p124 = scmp.ne.s32.totalorder %s115, %s116
      %p125 = scmp.eq.s32.totalorder %s21, 0
      %p126 = por %p124, %p125
      %p127 = scmp.ne.s32.totalorder %s115, %s116
      %p128 = scmp.eq.s32.totalorder %s22, 1
      %p129 = por %p127, %p128
      %p131 = scmp.ne.s32.totalorder %s116, %s130
      %p132 = scmp.eq.s32.totalorder %s22, 0
      %p133 = por %p131, %p132
      %s135 = sadd.s32 %s134, 1
      %p138 = scmp.eq.s32.totalorder %s16, 1
      %p139 = scmp.ne.s32.totalorder %s134, %s136
      %p140 = scmp.eq.s32.totalorder %s16, 0
      %p141 = por %p139, %p140
      %p142 = scmp.ne.s32.totalorder %s134, %s136
      %p143 = scmp.eq.s32.totalorder %s21, 1
      %p144 = por %p142, %p143
      %p145 = scmp.ne.s32.totalorder %s136, %s137
      %p146 = scmp.eq.s32.totalorder %s21, 0
      %p147 = por %p145, %p146
      %p148 = scmp.ne.s32.totalorder %s136, %s137
      %p149 = scmp.eq.s32.totalorder %s22, 1
      %p150 = por %p148, %p149
      %p152 = scmp.ne.s32.totalorder %s137, %s151
      %p153 = scmp.eq.s32.totalorder %s22, 0
      %p154 = por %p152, %p153
      %s156 = sadd.s32 %s155, 1
      %p159 = scmp.eq.s32.totalorder %s16, 1
      %p160 = scmp.ne.s32.totalorder %s155, %s157
      %p161 = scmp.eq.s32.totalorder %s16, 0
      %p162 = por %p160, %p161
      %p163 = scmp.ne.s32.totalorder %s155, %s157
      %p164 = scmp.eq.s32.totalorder %s21, 1
      %p165 = por %p163, %p164
      %p166 = scmp.ne.s32.totalorder %s157, %s158
      %p167 = scmp.eq.s32.totalorder %s21, 0
      %p168 = por %p166, %p167
      %p169 = scmp.ne.s32.totalorder %s157, %s158
      %p170 = scmp.eq.s32.totalorder %s22, 1
      %p171 = por %p169, %p170
      %p173 = scmp.ne.s32.totalorder %s158, %s172
      %p174 = scmp.eq.s32.totalorder %s22, 0
      %p175 = por %p173, %p174
      %s177 = sadd.s32 %s176, 1
      %p180 = scmp.eq.s32.totalorder %s16, 1
      %p181 = scmp.ne.s32.totalorder %s176, %s178
      %p182 = scmp.eq.s32.totalorder %s16, 0
      %p183 = por %p181, %p182
      %p184 = scmp.ne.s32.totalorder %s176, %s178
      %p185 = scmp.eq.s32.totalorder %s21, 1
      %p186 = por %p184, %p185
      %p187 = scmp.ne.s32.totalorder %s178, %s179
      %p188 = scmp.eq.s32.totalorder %s21, 0
      %p189 = por %p187, %p188
      %p190 = scmp.ne.s32.totalorder %s178, %s179
      %p191 = scmp.eq.s32.totalorder %s22, 1
      %p192 = por %p190, %p191
      %p194 = scmp.ne.s32.totalorder %s179, %s193
      %p195 = scmp.eq.s32.totalorder %s22, 0
      %p196 = por %p194, %p195
      %s198 = sadd.s32 %s197, 1
      %p201 = scmp.eq.s32.totalorder %s16, 1
      %p202 = scmp.ne.s32.totalorder %s197, %s199
      %p203 = scmp.eq.s32.totalorder %s16, 0
      %p204 = por %p202, %p203
      %p205 = scmp.ne.s32.totalorder %s197, %s199
      %p206 = scmp.eq.s32.totalorder %s21, 1
      %p207 = por %p205, %p206
      %p208 = scmp.ne.s32.totalorder %s199, %s200
      %p209 = scmp.eq.s32.totalorder %s21, 0
      %p210 = por %p208, %p209
      %p211 = scmp.ne.s32.totalorder %s199, %s200
      %p212 = scmp.eq.s32.totalorder %s22, 1
      %p213 = por %p211, %p212
      %p215 = scmp.ne.s32.totalorder %s200, %s214
      %p216 = scmp.eq.s32.totalorder %s22, 0
      %p217 = por %p215, %p216
      %s218 = ssub.s32 %s16, %s23
      %p219 = scmp.eq.s32.totalorder %s218, 0
      %s221 = sadd.s32 %s220, 1
      %s222 = scalar_select %p219, %s220, %s221
      %p225 = pneg %p219
      %p226 = scmp.eq.s32.totalorder %s16, 1
      %p227 = por %p225, %p226
      %p228 = scmp.ne.s32.totalorder %s220, %s223
      %p229 = scmp.eq.s32.totalorder %s16, 0
      %p230 = por %p228, %p229
      %p231 = scmp.ne.s32.totalorder %s220, %s223
      %p232 = scmp.eq.s32.totalorder %s21, 1
      %p233 = por %p231, %p232
      %p234 = scmp.ne.s32.totalorder %s223, %s224
      %p235 = scmp.eq.s32.totalorder %s21, 0
      %p236 = por %p234, %p235
      %p237 = scmp.ne.s32.totalorder %s223, %s224
      %p238 = scmp.eq.s32.totalorder %s22, 1
      %p239 = por %p237, %p238
      %p241 = scmp.ne.s32.totalorder %s224, %s240
      %p242 = scmp.eq.s32.totalorder %s22, 0
      %p243 = por %p241, %p242
      %p244 = scmp.le.s32.totalorder 1, %s16
      %p245 = scmp.lt.s32.totalorder %s16, 3
      %p246 = pnand %p244, %p245
      %p247 = pneg %p246
      // Predicated region
      $region9: #{dqn_forward.1} parent=5 // pred_check
        _
      $region10: #{dqn_forward.1} parent=5 // pred_check_branch
        %249 = sbr.rel (%p246) target = $region12
      $region11: #{dqn_forward.1} parent=5 // pred_region
        %s250 = ssub.s32 %s16, 1
        // Predicated region
        $region13: #{dqn_forward.1} parent=11 // pred_check
          %p251 = pneg %p63
        $region14: #{dqn_forward.1} parent=11 // pred_check_branch
          %253 = sbr.rel (%p251) target = $region16
        $region15: #{dqn_forward.1} parent=11 // pred_region
          _
        $region16: #{dqn_forward.1} parent=11 // pred_fallthru
          _
        // Predicated region
        $region17: #{dqn_forward.1} parent=11 // pred_check
          %p254 = pneg %p84
        $region18: #{dqn_forward.1} parent=11 // pred_check_branch
          %256 = sbr.rel (%p254) target = $region20
        $region19: #{dqn_forward.1} parent=11 // pred_region
          _
        $region20: #{dqn_forward.1} parent=11 // pred_fallthru
          _
        // Predicated region
        $region21: #{dqn_forward.1} parent=11 // pred_check
          %p257 = pneg %p105
        $region22: #{dqn_forward.1} parent=11 // pred_check_branch
          %259 = sbr.rel (%p257) target = $region24
        $region23: #{dqn_forward.1} parent=11 // pred_region
          _
        $region24: #{dqn_forward.1} parent=11 // pred_fallthru
          _
        // Predicated region
        $region25: #{dqn_forward.1} parent=11 // pred_check
          %p260 = pneg %p126
        $region26: #{dqn_forward.1} parent=11 // pred_check_branch
          %262 = sbr.rel (%p260) target = $region28
        $region27: #{dqn_forward.1} parent=11 // pred_region
          _
        $region28: #{dqn_forward.1} parent=11 // pred_fallthru
          _
        // Predicated region
        $region29: #{dqn_forward.1} parent=11 // pred_check
          %p263 = pneg %p147
        $region30: #{dqn_forward.1} parent=11 // pred_check_branch
          %265 = sbr.rel (%p263) target = $region32
        $region31: #{dqn_forward.1} parent=11 // pred_region
          _
        $region32: #{dqn_forward.1} parent=11 // pred_fallthru
          _
        // Predicated region
        $region33: #{dqn_forward.1} parent=11 // pred_check
          %p266 = pneg %p168
        $region34: #{dqn_forward.1} parent=11 // pred_check_branch
          %268 = sbr.rel (%p266) target = $region36
        $region35: #{dqn_forward.1} parent=11 // pred_region
          _
        $region36: #{dqn_forward.1} parent=11 // pred_fallthru
          _
        // Predicated region
        $region37: #{dqn_forward.1} parent=11 // pred_check
          %p269 = pneg %p189
        $region38: #{dqn_forward.1} parent=11 // pred_check_branch
          %271 = sbr.rel (%p269) target = $region40
        $region39: #{dqn_forward.1} parent=11 // pred_region
          %s273 = ssub.s32 1024, 1024
          %274 = vsyncadd [#allocation3], %s273
          %s275 = sshll.u32 [#allocation2], 4
          %s276 = int_to_ptr.vmem [resolvable:$true] %s275
          %281 = dma.hbm_to_vmem [thread:$0]  %s7, 1024, %s276, [#allocation3], 64, 64, 4
        $region40: #{dqn_forward.1} parent=11 // pred_fallthru
          _
        // Predicated region
        $region41: #{dqn_forward.1} parent=11 // pred_check
          %p282 = pneg %p210
        $region42: #{dqn_forward.1} parent=11 // pred_check_branch
          %284 = sbr.rel (%p282) target = $region44
        $region43: #{dqn_forward.1} parent=11 // pred_region
          _
        $region44: #{dqn_forward.1} parent=11 // pred_fallthru
          _
      $region12: #{dqn_forward.1} parent=5 // pred_fallthru
        _
      %p285 = scmp.lt.s32.totalorder %s16, 2
      // Predicated region
      $region45: #{dqn_forward.1} parent=5 // pred_check
        %p286 = pneg %p285
      $region46: #{dqn_forward.1} parent=5 // pred_check_branch
        %288 = sbr.rel (%p286) target = $region48
      $region47: #{dqn_forward.1} parent=5 // pred_region
        // Predicated region
        $region49: #{dqn_forward.1} parent=47 // pred_check
          %p289 = pneg %p36
        $region50: #{dqn_forward.1} parent=47 // pred_check_branch
          %291 = sbr.rel (%p289) target = $region52
        $region51: #{dqn_forward.1} parent=47 // pred_region
          %s292 = smul.u32 16, %s16
          %p293 = scmp.lt.s32.totalorder %s292, 31
          %s294 = scalar_select %p293, %s292, 31
          %s295 = smul.addr %s294, 8
          %s296 = scalar_lea.vmem %s0, %s295
          %s297 = smul.u32 16, %s16
        $region52: #{dqn_forward.1} parent=47 // pred_fallthru
          _
      $region48: #{dqn_forward.1} parent=5 // pred_fallthru
        _
      %p298 = scmp.le.s32.totalorder 1, %s16
      %p299 = scmp.lt.s32.totalorder %s16, 3
      %p300 = pnand %p298, %p299
      %p301 = pneg %p300
      // Predicated region
      $region53: #{dqn_forward.1} parent=5 // pred_check
        _
      $region54: #{dqn_forward.1} parent=5 // pred_check_branch
        %303 = sbr.rel (%p300) target = $region56
      $region55: #{dqn_forward.1} parent=5 // pred_region
        %s304 = ssub.s32 %s16, 1
        // Predicated region
        $region57: #{dqn_forward.1} parent=55 // pred_check
          %p305 = pneg %p189
        $region58: #{dqn_forward.1} parent=55 // pred_check_branch
          %307 = sbr.rel (%p305) target = $region60
        $region59: #{dqn_forward.1} parent=55 // pred_region
          %308 = dma.done [#allocation3], 1024
        $region60: #{dqn_forward.1} parent=55 // pred_fallthru
          _
        %s309 = smul.u32 16, %s21
        %p310 = scmp.lt.s32.totalorder %s309, 31
        %s311 = scalar_select %p310, %s309, 31
        %s312 = smul.addr %s311, 8
        %s313 = scalar_lea.vmem %s0, %s312
        %p314 = pneg %p42
        %p315 = pneg %p39
        %p316 = pneg %p63
        %p317 = pneg %p60
        %p318 = pneg %p84
        %p319 = pneg %p81
        %p320 = pneg %p105
        %p321 = pneg %p102
        %p322 = pneg %p126
        %p323 = pneg %p123
        %p324 = pneg %p147
        %p325 = pneg %p144
        %p326 = pneg %p168
        %p327 = pneg %p165
        %p328 = pneg %p189
        %p329 = pneg %p186
        %p330 = pneg %p210
        %p331 = pneg %p207
        %p332 = pneg %p236
        %p333 = pneg %p233
        %s334 = smul.u32 16, %s21
        %p335 = scmp.lt.s32.totalorder %s334, 31
        %s336 = scalar_select %p335, %s334, 31
        %s337 = smul.addr %s336, 4
        %s338 = scalar_lea.vmem %s9, %s337
        %s339 = smul.u32 16, %s21
        %p340 = scmp.lt.s32.totalorder %s339, 31
        %s341 = scalar_select %p340, %s339, 31
        %s342 = smul.addr %s341, 8
        %s343 = scalar_lea.vmem %s0, %s342
        %s344 = smul.u32 16, %s21
        %s345 = smul.u32 16, %s21
        %p346 = scmp.lt.s32.totalorder %s345, 31
        %s347 = scalar_select %p346, %s345, 31
        %s348 = smul.addr %s347, 4
        %s349 = scalar_lea.vmem %s9, %s348
        %s350 = smul.u32 16, %s21
        %v352 = vld [vmem:[%s343] sm:$0xff]
        %v353 = vld [vmem:[%s343 + $0x8] sm:$0xff]
        %v354 = vld [vmem:[%s343 + $0x10] sm:$0xff]
        %v355 = vld [vmem:[%s343 + $0x18] sm:$0xff]
        %v356 = vld [vmem:[%s343 + $0x20] sm:$0xff]
        %v357 = vld [vmem:[%s343 + $0x28] sm:$0xff]
        %v358 = vld [vmem:[%s343 + $0x30] sm:$0xff]
        %v359 = vld [vmem:[%s343 + $0x38] sm:$0xff]
        %v360 = vld [vmem:[%s343 + $0x40] sm:$0xff]
        %v361 = vld [vmem:[%s343 + $0x48] sm:$0xff]
        %v362 = vld [vmem:[%s343 + $0x50] sm:$0xff]
        %v363 = vld [vmem:[%s343 + $0x58] sm:$0xff]
        %v364 = vld [vmem:[%s343 + $0x60] sm:$0xff]
        %v365 = vld [vmem:[%s343 + $0x68] sm:$0xff]
        %v366 = vld [vmem:[%s343 + $0x70] sm:$0xff]
        %v367 = vld [vmem:[%s343 + $0x78] sm:$0xff]
        %v368 = vpack.c.bf16 %v353, %v352
        %v369 = vpack.c.bf16 %v355, %v354
        %v370 = vpack.c.bf16 %v357, %v356
        %v371 = vpack.c.bf16 %v359, %v358
        %v372 = vpack.c.bf16 %v361, %v360
        %v373 = vpack.c.bf16 %v363, %v362
        %v374 = vpack.c.bf16 %v365, %v364
        %v375 = vpack.c.bf16 %v367, %v366
        %v376 = vld [vmem:[%s1] sm:$0xf]
        %v377 = vld [vmem:[%s2] sm:$0x1]
        %v379 = vlaneseq
        %v380 = vshrl.u32 %v379, 7
        %v381 = vsub.s32 0, %v380
        %v382 = vrot.slane %v377, %v381
        %vm384 = vcmask 64512
        %v386 = vsel %vm384, %v368, 0
        %v389 = vsel %vm384, %v369, 0
        %v392 = vsel %vm384, %v370, 0
        %v395 = vsel %vm384, %v371, 0
        %v398 = vsel %vm384, %v372, 0
        %v401 = vsel %vm384, %v373, 0
        %v404 = vsel %vm384, %v374, 0
        %v407 = vsel %vm384, %v375, 0
        %vm409 = vcmask 1043456
        %v411 = vsel %vm409, %v376, 0
        %413 = vmatprep.subr.bf16.mxu0 0
        %414 = vmatpush1.bf16.msra.mxu0 %v411
        %415 = vmatprep.subr.bf16.mxu0 0
        %416 = vmatpush1.bf16.msra.mxu0 0
        %417 = vmatprep.subr.bf16.mxu0 0
        %418 = vmatpush1.bf16.msra.mxu0 0
        %419 = vmatprep.subr.bf16.mxu0 0
        %420 = vmatpush1.bf16.msra.mxu0 0
        %421 = vmatprep.subr.bf16.mxu0 0
        %422 = vmatpush1.bf16.msra.mxu0 0
        %423 = vmatprep.subr.bf16.mxu0 0
        %424 = vmatpush1.bf16.msra.mxu0 0
        %425 = vmatprep.subr.bf16.mxu0 0
        %426 = vmatpush1.bf16.msra.mxu0 0
        %427 = vmatprep.subr.bf16.mxu0 0
        %428 = vmatpush1.bf16.msra.mxu0 0
        %429 = vmatprep.subr.bf16.mxu0 0
        %430 = vmatpush1.bf16.msra.mxu0 0
        %431 = vmatprep.subr.bf16.mxu0 0
        %432 = vmatpush1.bf16.msra.mxu0 0
        %433 = vmatprep.subr.bf16.mxu0 0
        %434 = vmatpush1.bf16.msra.mxu0 0
        %435 = vmatprep.subr.bf16.mxu0 0
        %436 = vmatpush1.bf16.msra.mxu0 0
        %437 = vmatprep.subr.bf16.mxu0 0
        %438 = vmatpush1.bf16.msra.mxu0 0
        %439 = vmatprep.subr.bf16.mxu0 0
        %440 = vmatpush1.bf16.msra.mxu0 0
        %441 = vmatprep.subr.bf16.mxu0 0
        %442 = vmatpush1.bf16.msra.mxu0 0
        %443 = vmatprep.subr.bf16.mxu0 0
        %444 = vmatpush1.bf16.msra.mxu0 0
        %445 = vmatprep.mubr.bf16.mxu0 0
        %446 = vmatmul.mubr.bf16.gmra.mrb[0].mxu0 %v386
        %v447 = vpop.f32.mrb[0].mxu0
        %v448 = vadd.f32 %v382, %v447
        %v449 = vpop.f32.mrb[0].mxu0
        %v450 = vpop.f32.mrb[0].mxu0
        %v451 = vadd.f32 %v382, %v450
        %v452 = vpop.f32.mrb[0].mxu0
        %453 = vmatprep.mubr.bf16.mxu0 0
        %454 = vmatmul.mubr.bf16.gmra.mrb[0].mxu0 %v389
        %v455 = vpop.f32.mrb[0].mxu0
        %v456 = vadd.f32 %v382, %v455
        %v457 = vpop.f32.mrb[0].mxu0
        %v458 = vpop.f32.mrb[0].mxu0
        %v459 = vadd.f32 %v382, %v458
        %v460 = vpop.f32.mrb[0].mxu0
        %461 = vmatprep.mubr.bf16.mxu0 0
        %462 = vmatmul.mubr.bf16.gmra.mrb[0].mxu0 %v392
        %v463 = vpop.f32.mrb[0].mxu0
        %v464 = vadd.f32 %v382, %v463
        %v465 = vpop.f32.mrb[0].mxu0
        %v466 = vpop.f32.mrb[0].mxu0
        %v467 = vadd.f32 %v382, %v466
        %v468 = vpop.f32.mrb[0].mxu0
        %469 = vmatprep.mubr.bf16.mxu0 0
        %470 = vmatmul.mubr.bf16.gmra.mrb[0].mxu0 %v395
        %v471 = vpop.f32.mrb[0].mxu0
        %v472 = vadd.f32 %v382, %v471
        %v473 = vpop.f32.mrb[0].mxu0
        %v474 = vpop.f32.mrb[0].mxu0
        %v475 = vadd.f32 %v382, %v474
        %v476 = vpop.f32.mrb[0].mxu0
        %477 = vmatprep.mubr.bf16.mxu0 0
        %478 = vmatmul.mubr.bf16.gmra.mrb[0].mxu0 %v398
        %v479 = vpop.f32.mrb[0].mxu0
        %v480 = vadd.f32 %v382, %v479
        %v481 = vpop.f32.mrb[0].mxu0
        %v482 = vpop.f32.mrb[0].mxu0
        %v483 = vadd.f32 %v382, %v482
        %v484 = vpop.f32.mrb[0].mxu0
        %485 = vmatprep.mubr.bf16.mxu0 0
        %486 = vmatmul.mubr.bf16.gmra.mrb[0].mxu0 %v401
        %v487 = vpop.f32.mrb[0].mxu0
        %v488 = vadd.f32 %v382, %v487
        %v489 = vpop.f32.mrb[0].mxu0
        %v490 = vpop.f32.mrb[0].mxu0
        %v491 = vadd.f32 %v382, %v490
        %v492 = vpop.f32.mrb[0].mxu0
        %493 = vmatprep.mubr.bf16.mxu0 0
        %494 = vmatmul.mubr.bf16.gmra.mrb[0].mxu0 %v404
        %v495 = vpop.f32.mrb[0].mxu0
        %v496 = vadd.f32 %v382, %v495
        %v497 = vpop.f32.mrb[0].mxu0
        %v498 = vpop.f32.mrb[0].mxu0
        %v499 = vadd.f32 %v382, %v498
        %v500 = vpop.f32.mrb[0].mxu0
        %501 = vmatprep.mubr.bf16.mxu0 0
        %502 = vmatmul.mubr.bf16.gmra.mrb[0].mxu0 %v407
        %v503 = vpop.f32.mrb[0].mxu0
        %v504 = vadd.f32 %v382, %v503
        %v505 = vpop.f32.mrb[0].mxu0
        %v506 = vpop.f32.mrb[0].mxu0
        %v507 = vadd.f32 %v382, %v506
        %v508 = vpop.f32.mrb[0].mxu0
        %509 = vdwg.mxu0
        %v510 = vmax.f32 %v448, 0.0
        %v511 = vmax.f32 %v451, 0.0
        %v512 = vmax.f32 %v456, 0.0
        %v513 = vmax.f32 %v459, 0.0
        %v514 = vmax.f32 %v464, 0.0
        %v515 = vmax.f32 %v467, 0.0
        %v516 = vmax.f32 %v472, 0.0
        %v517 = vmax.f32 %v475, 0.0
        %v518 = vmax.f32 %v480, 0.0
        %v519 = vmax.f32 %v483, 0.0
        %v520 = vmax.f32 %v488, 0.0
        %v521 = vmax.f32 %v491, 0.0
        %v522 = vmax.f32 %v496, 0.0
        %v523 = vmax.f32 %v499, 0.0
        %v524 = vmax.f32 %v504, 0.0
        %v525 = vmax.f32 %v507, 0.0
        %v526 = vpack.c.bf16 %v511, %v510
        %v527 = vpack.c.bf16 %v513, %v512
        %v528 = vpack.c.bf16 %v515, %v514
        %v529 = vpack.c.bf16 %v517, %v516
        %v530 = vpack.c.bf16 %v519, %v518
        %v531 = vpack.c.bf16 %v521, %v520
        %v532 = vpack.c.bf16 %v523, %v522
        %v533 = vpack.c.bf16 %v525, %v524
        %v534 = vld [vmem:[%s3] sm:$0xff]
        %v535 = vld [vmem:[%s3 + $0x8] sm:$0xff]
        %v536 = vld [vmem:[%s3 + $0x10] sm:$0xff]
        %v537 = vld [vmem:[%s3 + $0x18] sm:$0xff]
        %v538 = vld [vmem:[%s3 + $0x20] sm:$0xff]
        %v539 = vld [vmem:[%s3 + $0x28] sm:$0xff]
        %v540 = vld [vmem:[%s3 + $0x30] sm:$0xff]
        %v541 = vld [vmem:[%s3 + $0x38] sm:$0xff]
        %v542 = vld [vmem:[%s3 + $0x40] sm:$0xff]
        %v543 = vld [vmem:[%s3 + $0x48] sm:$0xff]
        %v544 = vld [vmem:[%s3 + $0x50] sm:$0xff]
        %v545 = vld [vmem:[%s3 + $0x58] sm:$0xff]
        %v546 = vld [vmem:[%s3 + $0x60] sm:$0xff]
        %v547 = vld [vmem:[%s3 + $0x68] sm:$0xff]
        %v548 = vld [vmem:[%s3 + $0x70] sm:$0xff]
        %v549 = vld [vmem:[%s3 + $0x78] sm:$0xff]
        %v550 = vld [vmem:[%s4] sm:$0x3]
        %v552 = vlaneseq
        %v553 = vshrl.u32 %v552, 7
        %v554 = vsub.s32 0, %v553
        %v555 = vrot.slane %v550, %v554
        %v556 = vlaneseq
        %v557 = vshrl.u32 %v556, 7
        %v558 = vsub.s32 1, %v557
        %v559 = vrot.slane %v550, %v558
        %v578 = vunpack.c.l.b16 %v534
        %v579 = vunpack.c.h.b16 %v534
        %v580 = vunpack.c.l.b16 %v535
        %v581 = vunpack.c.h.b16 %v535
        %v582 = vunpack.c.l.b16 %v536
        %v583 = vunpack.c.h.b16 %v536
        %v584 = vunpack.c.l.b16 %v537
        %v585 = vunpack.c.h.b16 %v537
        %v586 = vunpack.c.l.b16 %v538
        %v587 = vunpack.c.h.b16 %v538
        %v588 = vunpack.c.l.b16 %v539
        %v589 = vunpack.c.h.b16 %v539
        %v590 = vunpack.c.l.b16 %v540
        %v591 = vunpack.c.h.b16 %v540
        %v592 = vunpack.c.l.b16 %v541
        %v593 = vunpack.c.h.b16 %v541
        %v594 = vunpack.c.l.b16 %v542
        %v595 = vunpack.c.h.b16 %v542
        %v596 = vunpack.c.l.b16 %v543
        %v597 = vunpack.c.h.b16 %v543
        %v598 = vunpack.c.l.b16 %v544
        %v599 = vunpack.c.h.b16 %v544
        %v600 = vunpack.c.l.b16 %v545
        %v601 = vunpack.c.h.b16 %v545
        %v602 = vunpack.c.l.b16 %v546
        %v603 = vunpack.c.h.b16 %v546
        %v604 = vunpack.c.l.b16 %v547
        %v605 = vunpack.c.h.b16 %v547
        %v606 = vunpack.c.l.b16 %v548
        %v607 = vunpack.c.h.b16 %v548
        %v608 = vunpack.c.l.b16 %v549
        %v609 = vunpack.c.h.b16 %v549
        %v610 = vpack.c.b16 %v580, %v578
        %v611 = vpack.c.b16 %v581, %v579
        %v612 = vpack.c.b16 %v584, %v582
        %v613 = vpack.c.b16 %v585, %v583
        %v614 = vpack.c.b16 %v588, %v586
        %v615 = vpack.c.b16 %v589, %v587
        %v616 = vpack.c.b16 %v592, %v590
        %v617 = vpack.c.b16 %v593, %v591
        %v618 = vpack.c.b16 %v596, %v594
        %v619 = vpack.c.b16 %v597, %v595
        %v620 = vpack.c.b16 %v600, %v598
        %v621 = vpack.c.b16 %v601, %v599
        %v622 = vpack.c.b16 %v604, %v602
        %v623 = vpack.c.b16 %v605, %v603
        %v624 = vpack.c.b16 %v608, %v606
        %v625 = vpack.c.b16 %v609, %v607
        %642 = vmatprep.subr.bf16.mxu0 %v611
        %643 = vmatpush1.bf16.msra.mxu0 %v610
        %644 = vmatprep.subr.bf16.mxu0 %v613
        %645 = vmatpush1.bf16.msra.mxu0 %v612
        %646 = vmatprep.subr.bf16.mxu0 %v615
        %647 = vmatpush1.bf16.msra.mxu0 %v614
        %648 = vmatprep.subr.bf16.mxu0 %v617
        %649 = vmatpush1.bf16.msra.mxu0 %v616
        %650 = vmatprep.subr.bf16.mxu0 %v619
        %651 = vmatpush1.bf16.msra.mxu0 %v618
        %652 = vmatprep.subr.bf16.mxu0 %v621
        %653 = vmatpush1.bf16.msra.mxu0 %v620
        %654 = vmatprep.subr.bf16.mxu0 %v623
        %655 = vmatpush1.bf16.msra.mxu0 %v622
        %656 = vmatprep.subr.bf16.mxu0 %v625
        %657 = vmatpush1.bf16.msra.mxu0 %v624
        %658 = vmatprep.subr.bf16.mxu0 0
        %659 = vmatpush1.bf16.msra.mxu0 0
        %660 = vmatprep.subr.bf16.mxu0 0
        %661 = vmatpush1.bf16.msra.mxu0 0
        %662 = vmatprep.subr.bf16.mxu0 0
        %663 = vmatpush1.bf16.msra.mxu0 0
        %664 = vmatprep.subr.bf16.mxu0 0
        %665 = vmatpush1.bf16.msra.mxu0 0
        %666 = vmatprep.subr.bf16.mxu0 0
        %667 = vmatpush1.bf16.msra.mxu0 0
        %668 = vmatprep.subr.bf16.mxu0 0
        %669 = vmatpush1.bf16.msra.mxu0 0
        %670 = vmatprep.subr.bf16.mxu0 0
        %671 = vmatpush1.bf16.msra.mxu0 0
        %672 = vmatprep.subr.bf16.mxu0 0
        %673 = vmatpush1.bf16.msra.mxu0 0
        %674 = vmatprep.mubr.bf16.mxu0 0
        %675 = vmatmul.mubr.bf16.gmra.mrb[0].mxu0 %v526
        %v676 = vpop.f32.mrb[0].mxu0
        %v677 = vadd.f32 %v555, %v676
        %v678 = vpop.f32.mrb[0].mxu0
        %v679 = vadd.f32 %v559, %v678
        %v680 = vpop.f32.mrb[0].mxu0
        %v681 = vadd.f32 %v555, %v680
        %v682 = vpop.f32.mrb[0].mxu0
        %v683 = vadd.f32 %v559, %v682
        %684 = vmatprep.mubr.bf16.mxu0 0
        %685 = vmatmul.mubr.bf16.gmra.mrb[0].mxu0 %v527
        %v686 = vpop.f32.mrb[0].mxu0
        %v687 = vadd.f32 %v555, %v686
        %v688 = vpop.f32.mrb[0].mxu0
        %v689 = vadd.f32 %v559, %v688
        %v690 = vpop.f32.mrb[0].mxu0
        %v691 = vadd.f32 %v555, %v690
        %v692 = vpop.f32.mrb[0].mxu0
        %v693 = vadd.f32 %v559, %v692
        %694 = vmatprep.mubr.bf16.mxu0 0
        %695 = vmatmul.mubr.bf16.gmra.mrb[0].mxu0 %v528
        %v696 = vpop.f32.mrb[0].mxu0
        %v697 = vadd.f32 %v555, %v696
        %v698 = vpop.f32.mrb[0].mxu0
        %v699 = vadd.f32 %v559, %v698
        %v700 = vpop.f32.mrb[0].mxu0
        %v701 = vadd.f32 %v555, %v700
        %v702 = vpop.f32.mrb[0].mxu0
        %v703 = vadd.f32 %v559, %v702
        %704 = vmatprep.mubr.bf16.mxu0 0
        %705 = vmatmul.mubr.bf16.gmra.mrb[0].mxu0 %v529
        %v706 = vpop.f32.mrb[0].mxu0
        %v707 = vadd.f32 %v555, %v706
        %v708 = vpop.f32.mrb[0].mxu0
        %v709 = vadd.f32 %v559, %v708
        %v710 = vpop.f32.mrb[0].mxu0
        %v711 = vadd.f32 %v555, %v710
        %v712 = vpop.f32.mrb[0].mxu0
        %v713 = vadd.f32 %v559, %v712
        %714 = vmatprep.mubr.bf16.mxu0 0
        %715 = vmatmul.mubr.bf16.gmra.mrb[0].mxu0 %v530
        %v716 = vpop.f32.mrb[0].mxu0
        %v717 = vadd.f32 %v555, %v716
        %v718 = vpop.f32.mrb[0].mxu0
        %v719 = vadd.f32 %v559, %v718
        %v720 = vpop.f32.mrb[0].mxu0
        %v721 = vadd.f32 %v555, %v720
        %v722 = vpop.f32.mrb[0].mxu0
        %v723 = vadd.f32 %v559, %v722
        %724 = vmatprep.mubr.bf16.mxu0 0
        %725 = vmatmul.mubr.bf16.gmra.mrb[0].mxu0 %v531
        %v726 = vpop.f32.mrb[0].mxu0
        %v727 = vadd.f32 %v555, %v726
        %v728 = vpop.f32.mrb[0].mxu0
        %v729 = vadd.f32 %v559, %v728
        %v730 = vpop.f32.mrb[0].mxu0
        %v731 = vadd.f32 %v555, %v730
        %v732 = vpop.f32.mrb[0].mxu0
        %v733 = vadd.f32 %v559, %v732
        %734 = vmatprep.mubr.bf16.mxu0 0
        %735 = vmatmul.mubr.bf16.gmra.mrb[0].mxu0 %v532
        %v736 = vpop.f32.mrb[0].mxu0
        %v737 = vadd.f32 %v555, %v736
        %v738 = vpop.f32.mrb[0].mxu0
        %v739 = vadd.f32 %v559, %v738
        %v740 = vpop.f32.mrb[0].mxu0
        %v741 = vadd.f32 %v555, %v740
        %v742 = vpop.f32.mrb[0].mxu0
        %v743 = vadd.f32 %v559, %v742
        %744 = vmatprep.mubr.bf16.mxu0 0
        %745 = vmatmul.mubr.bf16.gmra.mrb[0].mxu0 %v533
        %v746 = vpop.f32.mrb[0].mxu0
        %v747 = vadd.f32 %v555, %v746
        %v748 = vpop.f32.mrb[0].mxu0
        %v749 = vadd.f32 %v559, %v748
        %v750 = vpop.f32.mrb[0].mxu0
        %v751 = vadd.f32 %v555, %v750
        %v752 = vpop.f32.mrb[0].mxu0
        %v753 = vadd.f32 %v559, %v752
        %754 = vdwg.mxu0
        %v755 = vmax.f32 %v677, 0.0
        %v756 = vmax.f32 %v679, 0.0
        %v757 = vmax.f32 %v681, 0.0
        %v758 = vmax.f32 %v683, 0.0
        %v759 = vmax.f32 %v687, 0.0
        %v760 = vmax.f32 %v689, 0.0
        %v761 = vmax.f32 %v691, 0.0
        %v762 = vmax.f32 %v693, 0.0
        %v763 = vmax.f32 %v697, 0.0
        %v764 = vmax.f32 %v699, 0.0
        %v765 = vmax.f32 %v701, 0.0
        %v766 = vmax.f32 %v703, 0.0
        %v767 = vmax.f32 %v707, 0.0
        %v768 = vmax.f32 %v709, 0.0
        %v769 = vmax.f32 %v711, 0.0
        %v770 = vmax.f32 %v713, 0.0
        %v771 = vmax.f32 %v717, 0.0
        %v772 = vmax.f32 %v719, 0.0
        %v773 = vmax.f32 %v721, 0.0
        %v774 = vmax.f32 %v723, 0.0
        %v775 = vmax.f32 %v727, 0.0
        %v776 = vmax.f32 %v729, 0.0
        %v777 = vmax.f32 %v731, 0.0
        %v778 = vmax.f32 %v733, 0.0
        %v779 = vmax.f32 %v737, 0.0
        %v780 = vmax.f32 %v739, 0.0
        %v781 = vmax.f32 %v741, 0.0
        %v782 = vmax.f32 %v743, 0.0
        %v783 = vmax.f32 %v747, 0.0
        %v784 = vmax.f32 %v749, 0.0
        %v785 = vmax.f32 %v751, 0.0
        %v786 = vmax.f32 %v753, 0.0
        %v787 = vpack.c.bf16 %v757, %v755
        %v788 = vpack.c.bf16 %v758, %v756
        %v789 = vpack.c.bf16 %v761, %v759
        %v790 = vpack.c.bf16 %v762, %v760
        %v791 = vpack.c.bf16 %v765, %v763
        %v792 = vpack.c.bf16 %v766, %v764
        %v793 = vpack.c.bf16 %v769, %v767
        %v794 = vpack.c.bf16 %v770, %v768
        %v795 = vpack.c.bf16 %v773, %v771
        %v796 = vpack.c.bf16 %v774, %v772
        %v797 = vpack.c.bf16 %v777, %v775
        %v798 = vpack.c.bf16 %v778, %v776
        %v799 = vpack.c.bf16 %v781, %v779
        %v800 = vpack.c.bf16 %v782, %v780
        %v801 = vpack.c.bf16 %v785, %v783
        %v802 = vpack.c.bf16 %v786, %v784
        %v803 = vld [vmem:[%s5] sm:$0xf]
        %v804 = vld [vmem:[%s5 + $0x4] sm:$0xf]
        %v805 = vld [vmem:[%s5 + $0x8] sm:$0xf]
        %v806 = vld [vmem:[%s5 + $0xc] sm:$0xf]
        %v807 = vld [vmem:[%s5 + $0x10] sm:$0xf]
        %v808 = vld [vmem:[%s5 + $0x14] sm:$0xf]
        %v809 = vld [vmem:[%s5 + $0x18] sm:$0xf]
        %v810 = vld [vmem:[%s5 + $0x1c] sm:$0xf]
        %v811 = vld [vmem:[%s5 + $0x20] sm:$0xf]
        %v812 = vld [vmem:[%s5 + $0x24] sm:$0xf]
        %v813 = vld [vmem:[%s5 + $0x28] sm:$0xf]
        %v814 = vld [vmem:[%s5 + $0x2c] sm:$0xf]
        %v815 = vld [vmem:[%s5 + $0x30] sm:$0xf]
        %v816 = vld [vmem:[%s5 + $0x34] sm:$0xf]
        %v817 = vld [vmem:[%s5 + $0x38] sm:$0xf]
        %v818 = vld [vmem:[%s5 + $0x3c] sm:$0xf]
        %v819 = vld [vmem:[%s5 + $0x40] sm:$0xf]
        %v820 = vld [vmem:[%s5 + $0x44] sm:$0xf]
        %v821 = vld [vmem:[%s5 + $0x48] sm:$0xf]
        %v822 = vld [vmem:[%s5 + $0x4c] sm:$0xf]
        %v823 = vld [vmem:[%s5 + $0x50] sm:$0xf]
        %v824 = vld [vmem:[%s5 + $0x54] sm:$0xf]
        %v825 = vld [vmem:[%s5 + $0x58] sm:$0xf]
        %v826 = vld [vmem:[%s5 + $0x5c] sm:$0xf]
        %v827 = vld [vmem:[%s5 + $0x60] sm:$0xf]
        %v828 = vld [vmem:[%s5 + $0x64] sm:$0xf]
        %v829 = vld [vmem:[%s5 + $0x68] sm:$0xf]
        %v830 = vld [vmem:[%s5 + $0x6c] sm:$0xf]
        %v831 = vld [vmem:[%s5 + $0x70] sm:$0xf]
        %v832 = vld [vmem:[%s5 + $0x74] sm:$0xf]
        %v833 = vld [vmem:[%s5 + $0x78] sm:$0xf]
        %v834 = vld [vmem:[%s5 + $0x7c] sm:$0xf]
        %v835 = vld [vmem:[%s6] sm:$0x1]
        %v837 = vlaneseq
        %v838 = vshrl.u32 %v837, 7
        %v839 = vsub.s32 0, %v838
        %v840 = vrot.slane %v835, %v839
        %v874 = vunpack.c.l.b16 %v803
        %v875 = vunpack.c.l.b16 %v804
        %v876 = vunpack.c.l.b16 %v805
        %v877 = vunpack.c.l.b16 %v806
        %v878 = vunpack.c.l.b16 %v807
        %v879 = vunpack.c.l.b16 %v808
        %v880 = vunpack.c.l.b16 %v809
        %v881 = vunpack.c.l.b16 %v810
        %v882 = vunpack.c.l.b16 %v811
        %v883 = vunpack.c.l.b16 %v812
        %v884 = vunpack.c.l.b16 %v813
        %v885 = vunpack.c.l.b16 %v814
        %v886 = vunpack.c.l.b16 %v815
        %v887 = vunpack.c.l.b16 %v816
        %v888 = vunpack.c.l.b16 %v817
        %v889 = vunpack.c.l.b16 %v818
        %v890 = vunpack.c.l.b16 %v819
        %v891 = vunpack.c.l.b16 %v820
        %v892 = vunpack.c.l.b16 %v821
        %v893 = vunpack.c.l.b16 %v822
        %v894 = vunpack.c.l.b16 %v823
        %v895 = vunpack.c.l.b16 %v824
        %v896 = vunpack.c.l.b16 %v825
        %v897 = vunpack.c.l.b16 %v826
        %v898 = vunpack.c.l.b16 %v827
        %v899 = vunpack.c.l.b16 %v828
        %v900 = vunpack.c.l.b16 %v829
        %v901 = vunpack.c.l.b16 %v830
        %v902 = vunpack.c.l.b16 %v831
        %v903 = vunpack.c.l.b16 %v832
        %v904 = vunpack.c.l.b16 %v833
        %v905 = vunpack.c.l.b16 %v834
        %v906 = vpack.c.b16 %v875, %v874
        %v907 = vpack.c.b16 %v877, %v876
        %v908 = vpack.c.b16 %v879, %v878
        %v909 = vpack.c.b16 %v881, %v880
        %v910 = vpack.c.b16 %v883, %v882
        %v911 = vpack.c.b16 %v885, %v884
        %v912 = vpack.c.b16 %v887, %v886
        %v913 = vpack.c.b16 %v889, %v888
        %v914 = vpack.c.b16 %v891, %v890
        %v915 = vpack.c.b16 %v893, %v892
        %v916 = vpack.c.b16 %v895, %v894
        %v917 = vpack.c.b16 %v897, %v896
        %v918 = vpack.c.b16 %v899, %v898
        %v919 = vpack.c.b16 %v901, %v900
        %v920 = vpack.c.b16 %v903, %v902
        %v921 = vpack.c.b16 %v905, %v904
        %938 = vmatprep.subr.bf16.mxu0 0
        %939 = vmatpush1.bf16.msra.mxu0 %v906
        %940 = vmatprep.subr.bf16.mxu0 0
        %941 = vmatpush1.bf16.msra.mxu0 %v907
        %942 = vmatprep.subr.bf16.mxu0 0
        %943 = vmatpush1.bf16.msra.mxu0 %v908
        %944 = vmatprep.subr.bf16.mxu0 0
        %945 = vmatpush1.bf16.msra.mxu0 %v909
        %946 = vmatprep.subr.bf16.mxu0 0
        %947 = vmatpush1.bf16.msra.mxu0 %v910
        %948 = vmatprep.subr.bf16.mxu0 0
        %949 = vmatpush1.bf16.msra.mxu0 %v911
        %950 = vmatprep.subr.bf16.mxu0 0
        %951 = vmatpush1.bf16.msra.mxu0 %v912
        %952 = vmatprep.subr.bf16.mxu0 0
        %953 = vmatpush1.bf16.msra.mxu0 %v913
        %954 = vmatprep.subr.bf16.mxu0 0
        %955 = vmatpush1.bf16.msra.mxu0 %v914
        %956 = vmatprep.subr.bf16.mxu0 0
        %957 = vmatpush1.bf16.msra.mxu0 %v915
        %958 = vmatprep.subr.bf16.mxu0 0
        %959 = vmatpush1.bf16.msra.mxu0 %v916
        %960 = vmatprep.subr.bf16.mxu0 0
        %961 = vmatpush1.bf16.msra.mxu0 %v917
        %962 = vmatprep.subr.bf16.mxu0 0
        %963 = vmatpush1.bf16.msra.mxu0 %v918
        %964 = vmatprep.subr.bf16.mxu0 0
        %965 = vmatpush1.bf16.msra.mxu0 %v919
        %966 = vmatprep.subr.bf16.mxu0 0
        %967 = vmatpush1.bf16.msra.mxu0 %v920
        %968 = vmatprep.subr.bf16.mxu0 0
        %969 = vmatpush1.bf16.msra.mxu0 %v921
        %970 = vmatprep.mubr.bf16.mxu0 %v788
        %971 = vmatmul.mubr.bf16.gmra.mrb[0].mxu0 %v787
        %v972 = vpop.f32.mrb[0].mxu0
        %v973 = vadd.f32 %v840, %v972
        %v974 = vpop.f32.mrb[0].mxu0
        %v975 = vpop.f32.mrb[0].mxu0
        %v976 = vadd.f32 %v840, %v975
        %v977 = vpop.f32.mrb[0].mxu0
        %978 = vmatprep.mubr.bf16.mxu0 %v790
        %979 = vmatmul.mubr.bf16.gmra.mrb[0].mxu0 %v789
        %v980 = vpop.f32.mrb[0].mxu0
        %v981 = vadd.f32 %v840, %v980
        %v982 = vpop.f32.mrb[0].mxu0
        %v983 = vpop.f32.mrb[0].mxu0
        %v984 = vadd.f32 %v840, %v983
        %v985 = vpop.f32.mrb[0].mxu0
        %986 = vmatprep.mubr.bf16.mxu0 %v792
        %987 = vmatmul.mubr.bf16.gmra.mrb[0].mxu0 %v791
        %v988 = vpop.f32.mrb[0].mxu0
        %v989 = vadd.f32 %v840, %v988
        %v990 = vpop.f32.mrb[0].mxu0
        %v991 = vpop.f32.mrb[0].mxu0
        %v992 = vadd.f32 %v840, %v991
        %v993 = vpop.f32.mrb[0].mxu0
        %994 = vmatprep.mubr.bf16.mxu0 %v794
        %995 = vmatmul.mubr.bf16.gmra.mrb[0].mxu0 %v793
        %v996 = vpop.f32.mrb[0].mxu0
        %v997 = vadd.f32 %v840, %v996
        %v998 = vpop.f32.mrb[0].mxu0
        %v999 = vpop.f32.mrb[0].mxu0
        %v1000 = vadd.f32 %v840, %v999
        %v1001 = vpop.f32.mrb[0].mxu0
        %1002 = vmatprep.mubr.bf16.mxu0 %v796
        %1003 = vmatmul.mubr.bf16.gmra.mrb[0].mxu0 %v795
        %v1004 = vpop.f32.mrb[0].mxu0
        %v1005 = vadd.f32 %v840, %v1004
        %v1006 = vpop.f32.mrb[0].mxu0
        %v1007 = vpop.f32.mrb[0].mxu0
        %v1008 = vadd.f32 %v840, %v1007
        %v1009 = vpop.f32.mrb[0].mxu0
        %1010 = vmatprep.mubr.bf16.mxu0 %v798
        %1011 = vmatmul.mubr.bf16.gmra.mrb[0].mxu0 %v797
        %v1012 = vpop.f32.mrb[0].mxu0
        %v1013 = vadd.f32 %v840, %v1012
        %v1014 = vpop.f32.mrb[0].mxu0
        %v1015 = vpop.f32.mrb[0].mxu0
        %v1016 = vadd.f32 %v840, %v1015
        %v1017 = vpop.f32.mrb[0].mxu0
        %1018 = vmatprep.mubr.bf16.mxu0 %v800
        %1019 = vmatmul.mubr.bf16.gmra.mrb[0].mxu0 %v799
        %v1020 = vpop.f32.mrb[0].mxu0
        %v1021 = vadd.f32 %v840, %v1020
        %v1022 = vpop.f32.mrb[0].mxu0
        %v1023 = vpop.f32.mrb[0].mxu0
        %v1024 = vadd.f32 %v840, %v1023
        %v1025 = vpop.f32.mrb[0].mxu0
        %1026 = vmatprep.mubr.bf16.mxu0 %v802
        %1027 = vmatmul.mubr.bf16.gmra.mrb[0].mxu0 %v801
        %v1028 = vpop.f32.mrb[0].mxu0
        %v1029 = vadd.f32 %v840, %v1028
        %v1030 = vpop.f32.mrb[0].mxu0
        %v1031 = vpop.f32.mrb[0].mxu0
        %v1032 = vadd.f32 %v840, %v1031
        %v1033 = vpop.f32.mrb[0].mxu0
        %1034 = vdwg.mxu0
        %v1035 = vmax.f32 %v973, 0.0
        %v1036 = vmax.f32 %v976, 0.0
        %v1037 = vmax.f32 %v981, 0.0
        %v1038 = vmax.f32 %v984, 0.0
        %v1039 = vmax.f32 %v989, 0.0
        %v1040 = vmax.f32 %v992, 0.0
        %v1041 = vmax.f32 %v997, 0.0
        %v1042 = vmax.f32 %v1000, 0.0
        %v1043 = vmax.f32 %v1005, 0.0
        %v1044 = vmax.f32 %v1008, 0.0
        %v1045 = vmax.f32 %v1013, 0.0
        %v1046 = vmax.f32 %v1016, 0.0
        %v1047 = vmax.f32 %v1021, 0.0
        %v1048 = vmax.f32 %v1024, 0.0
        %v1049 = vmax.f32 %v1029, 0.0
        %v1050 = vmax.f32 %v1032, 0.0
        %v1051 = vpack.c.bf16 %v1036, %v1035
        %v1052 = vpack.c.bf16 %v1038, %v1037
        %v1053 = vpack.c.bf16 %v1040, %v1039
        %v1054 = vpack.c.bf16 %v1042, %v1041
        %v1055 = vpack.c.bf16 %v1044, %v1043
        %v1056 = vpack.c.bf16 %v1046, %v1045
        %v1057 = vpack.c.bf16 %v1048, %v1047
        %v1058 = vpack.c.bf16 %v1050, %v1049
        %v1059 = vld [vmem:[#allocation2] sm:$0xf]
        %v1060 = vld [vmem:[#allocation2 + $0x4] sm:$0xf]
        %v1061 = vld [vmem:[#allocation2 + $0x8] sm:$0xf]
        %v1062 = vld [vmem:[#allocation2 + $0xc] sm:$0xf]
        %v1063 = vld [vmem:[#allocation2 + $0x10] sm:$0xf]
        %v1064 = vld [vmem:[#allocation2 + $0x14] sm:$0xf]
        %v1065 = vld [vmem:[#allocation2 + $0x18] sm:$0xf]
        %v1066 = vld [vmem:[#allocation2 + $0x1c] sm:$0xf]
        %v1067 = vld [vmem:[#allocation2 + $0x20] sm:$0xf]
        %v1068 = vld [vmem:[#allocation2 + $0x24] sm:$0xf]
        %v1069 = vld [vmem:[#allocation2 + $0x28] sm:$0xf]
        %v1070 = vld [vmem:[#allocation2 + $0x2c] sm:$0xf]
        %v1071 = vld [vmem:[#allocation2 + $0x30] sm:$0xf]
        %v1072 = vld [vmem:[#allocation2 + $0x34] sm:$0xf]
        %v1073 = vld [vmem:[#allocation2 + $0x38] sm:$0xf]
        %v1074 = vld [vmem:[#allocation2 + $0x3c] sm:$0xf]
        %v1075 = vld [vmem:[%s8] sm:$0x1]
        %v1077 = vlaneseq
        %v1078 = vshrl.u32 %v1077, 7
        %v1079 = vsub.s32 0, %v1078
        %v1080 = vrot.slane %v1075, %v1079
        %v1098 = vunpack.c.l.b16 %v1059
        %v1099 = vunpack.c.l.b16 %v1060
        %v1100 = vunpack.c.l.b16 %v1061
        %v1101 = vunpack.c.l.b16 %v1062
        %v1102 = vunpack.c.l.b16 %v1063
        %v1103 = vunpack.c.l.b16 %v1064
        %v1104 = vunpack.c.l.b16 %v1065
        %v1105 = vunpack.c.l.b16 %v1066
        %v1106 = vunpack.c.l.b16 %v1067
        %v1107 = vunpack.c.l.b16 %v1068
        %v1108 = vunpack.c.l.b16 %v1069
        %v1109 = vunpack.c.l.b16 %v1070
        %v1110 = vunpack.c.l.b16 %v1071
        %v1111 = vunpack.c.l.b16 %v1072
        %v1112 = vunpack.c.l.b16 %v1073
        %v1113 = vunpack.c.l.b16 %v1074
        %v1114 = vpack.c.b16 %v1099, %v1098
        %v1115 = vpack.c.b16 %v1101, %v1100
        %v1116 = vpack.c.b16 %v1103, %v1102
        %v1117 = vpack.c.b16 %v1105, %v1104
        %v1118 = vpack.c.b16 %v1107, %v1106
        %v1119 = vpack.c.b16 %v1109, %v1108
        %v1120 = vpack.c.b16 %v1111, %v1110
        %v1121 = vpack.c.b16 %v1113, %v1112
        %1130 = vmatprep.subr.bf16.mxu0 0
        %1131 = vmatpush1.bf16.msra.mxu0 %v1114
        %1132 = vmatprep.subr.bf16.mxu0 0
        %1133 = vmatpush1.bf16.msra.mxu0 %v1115
        %1134 = vmatprep.subr.bf16.mxu0 0
        %1135 = vmatpush1.bf16.msra.mxu0 %v1116
        %1136 = vmatprep.subr.bf16.mxu0 0
        %1137 = vmatpush1.bf16.msra.mxu0 %v1117
        %1138 = vmatprep.subr.bf16.mxu0 0
        %1139 = vmatpush1.bf16.msra.mxu0 %v1118
        %1140 = vmatprep.subr.bf16.mxu0 0
        %1141 = vmatpush1.bf16.msra.mxu0 %v1119
        %1142 = vmatprep.subr.bf16.mxu0 0
        %1143 = vmatpush1.bf16.msra.mxu0 %v1120
        %1144 = vmatprep.subr.bf16.mxu0 0
        %1145 = vmatpush1.bf16.msra.mxu0 %v1121
        %1146 = vmatprep.subr.bf16.mxu0 0
        %1147 = vmatpush1.bf16.msra.mxu0 0
        %1148 = vmatprep.subr.bf16.mxu0 0
        %1149 = vmatpush1.bf16.msra.mxu0 0
        %1150 = vmatprep.subr.bf16.mxu0 0
        %1151 = vmatpush1.bf16.msra.mxu0 0
        %1152 = vmatprep.subr.bf16.mxu0 0
        %1153 = vmatpush1.bf16.msra.mxu0 0
        %1154 = vmatprep.subr.bf16.mxu0 0
        %1155 = vmatpush1.bf16.msra.mxu0 0
        %1156 = vmatprep.subr.bf16.mxu0 0
        %1157 = vmatpush1.bf16.msra.mxu0 0
        %1158 = vmatprep.subr.bf16.mxu0 0
        %1159 = vmatpush1.bf16.msra.mxu0 0
        %1160 = vmatprep.subr.bf16.mxu0 0
        %1161 = vmatpush1.bf16.msra.mxu0 0
        %1162 = vmatprep.mubr.bf16.mxu0 0
        %1163 = vmatmul.mubr.bf16.gmra.mrb[0].mxu0 %v1051
        %v1164 = vpop.f32.mrb[0].mxu0
        %v1165 = vadd.f32 %v1080, %v1164
        %v1166 = vpop.f32.mrb[0].mxu0
        %v1167 = vpop.f32.mrb[0].mxu0
        %v1168 = vadd.f32 %v1080, %v1167
        %v1169 = vpop.f32.mrb[0].mxu0
        %1170 = vmatprep.mubr.bf16.mxu0 0
        %1171 = vmatmul.mubr.bf16.gmra.mrb[0].mxu0 %v1052
        %v1172 = vpop.f32.mrb[0].mxu0
        %v1173 = vadd.f32 %v1080, %v1172
        %v1174 = vpop.f32.mrb[0].mxu0
        %v1175 = vpop.f32.mrb[0].mxu0
        %v1176 = vadd.f32 %v1080, %v1175
        %v1177 = vpop.f32.mrb[0].mxu0
        %1178 = vmatprep.mubr.bf16.mxu0 0
        %1179 = vmatmul.mubr.bf16.gmra.mrb[0].mxu0 %v1053
        %v1180 = vpop.f32.mrb[0].mxu0
        %v1181 = vadd.f32 %v1080, %v1180
        %v1182 = vpop.f32.mrb[0].mxu0
        %v1183 = vpop.f32.mrb[0].mxu0
        %v1184 = vadd.f32 %v1080, %v1183
        %v1185 = vpop.f32.mrb[0].mxu0
        %1186 = vmatprep.mubr.bf16.mxu0 0
        %1187 = vmatmul.mubr.bf16.gmra.mrb[0].mxu0 %v1054
        %v1188 = vpop.f32.mrb[0].mxu0
        %v1189 = vadd.f32 %v1080, %v1188
        %v1190 = vpop.f32.mrb[0].mxu0
        %v1191 = vpop.f32.mrb[0].mxu0
        %v1192 = vadd.f32 %v1080, %v1191
        %v1193 = vpop.f32.mrb[0].mxu0
        %1194 = vmatprep.mubr.bf16.mxu0 0
        %1195 = vmatmul.mubr.bf16.gmra.mrb[0].mxu0 %v1055
        %v1196 = vpop.f32.mrb[0].mxu0
        %v1197 = vadd.f32 %v1080, %v1196
        %v1198 = vpop.f32.mrb[0].mxu0
        %v1199 = vpop.f32.mrb[0].mxu0
        %v1200 = vadd.f32 %v1080, %v1199
        %v1201 = vpop.f32.mrb[0].mxu0
        %1202 = vmatprep.mubr.bf16.mxu0 0
        %1203 = vmatmul.mubr.bf16.gmra.mrb[0].mxu0 %v1056
        %v1204 = vpop.f32.mrb[0].mxu0
        %v1205 = vadd.f32 %v1080, %v1204
        %v1206 = vpop.f32.mrb[0].mxu0
        %v1207 = vpop.f32.mrb[0].mxu0
        %v1208 = vadd.f32 %v1080, %v1207
        %v1209 = vpop.f32.mrb[0].mxu0
        %1210 = vmatprep.mubr.bf16.mxu0 0
        %1211 = vmatmul.mubr.bf16.gmra.mrb[0].mxu0 %v1057
        %v1212 = vpop.f32.mrb[0].mxu0
        %v1213 = vadd.f32 %v1080, %v1212
        %v1214 = vpop.f32.mrb[0].mxu0
        %v1215 = vpop.f32.mrb[0].mxu0
        %v1216 = vadd.f32 %v1080, %v1215
        %v1217 = vpop.f32.mrb[0].mxu0
        %1218 = vmatprep.mubr.bf16.mxu0 0
        %1219 = vmatmul.mubr.bf16.gmra.mrb[0].mxu0 %v1058
        %v1220 = vpop.f32.mrb[0].mxu0
        %v1221 = vadd.f32 %v1080, %v1220
        %v1222 = vpop.f32.mrb[0].mxu0
        %v1223 = vpop.f32.mrb[0].mxu0
        %v1224 = vadd.f32 %v1080, %v1223
        %v1225 = vpop.f32.mrb[0].mxu0
        %1226 = vdwg.mxu0
        %v1227 = vpack.c.bf16 %v1168, %v1165
        %v1228 = vpack.c.bf16 %v1176, %v1173
        %v1229 = vpack.c.bf16 %v1184, %v1181
        %v1230 = vpack.c.bf16 %v1192, %v1189
        %v1231 = vpack.c.bf16 %v1200, %v1197
        %v1232 = vpack.c.bf16 %v1208, %v1205
        %v1233 = vpack.c.bf16 %v1216, %v1213
        %v1234 = vpack.c.bf16 %v1224, %v1221
        %v1243 = vunpack.c.l.b16 %v1227
        %v1244 = vunpack.c.h.b16 %v1227
        %v1245 = vunpack.c.l.b16 %v1228
        %v1246 = vunpack.c.h.b16 %v1228
        %v1247 = vunpack.c.l.b16 %v1229
        %v1248 = vunpack.c.h.b16 %v1229
        %v1249 = vunpack.c.l.b16 %v1230
        %v1250 = vunpack.c.h.b16 %v1230
        %v1251 = vunpack.c.l.b16 %v1231
        %v1252 = vunpack.c.h.b16 %v1231
        %v1253 = vunpack.c.l.b16 %v1232
        %v1254 = vunpack.c.h.b16 %v1232
        %v1255 = vunpack.c.l.b16 %v1233
        %v1256 = vunpack.c.h.b16 %v1233
        %v1257 = vunpack.c.l.b16 %v1234
        %v1258 = vunpack.c.h.b16 %v1234
        %v1259 = vpack.c.b16 %v1243, %v1243
        %v1260 = vpack.c.b16 %v1244, %v1244
        %v1261 = vpack.c.b16 %v1245, %v1245
        %v1262 = vpack.c.b16 %v1246, %v1246
        %v1263 = vpack.c.b16 %v1247, %v1247
        %v1264 = vpack.c.b16 %v1248, %v1248
        %v1265 = vpack.c.b16 %v1249, %v1249
        %v1266 = vpack.c.b16 %v1250, %v1250
        %v1267 = vpack.c.b16 %v1251, %v1251
        %v1268 = vpack.c.b16 %v1252, %v1252
        %v1269 = vpack.c.b16 %v1253, %v1253
        %v1270 = vpack.c.b16 %v1254, %v1254
        %v1271 = vpack.c.b16 %v1255, %v1255
        %v1272 = vpack.c.b16 %v1256, %v1256
        %v1273 = vpack.c.b16 %v1257, %v1257
        %v1274 = vpack.c.b16 %v1258, %v1258
        %1291 = vst [vmem:[%s349] sm:$0xf] %v1259
        %1292 = vst [vmem:[%s349 + $0x4] sm:$0xf] %v1260
        %1293 = vst [vmem:[%s349 + $0x8] sm:$0xf] %v1261
        %1294 = vst [vmem:[%s349 + $0xc] sm:$0xf] %v1262
        %1295 = vst [vmem:[%s349 + $0x10] sm:$0xf] %v1263
        %1296 = vst [vmem:[%s349 + $0x14] sm:$0xf] %v1264
        %1297 = vst [vmem:[%s349 + $0x18] sm:$0xf] %v1265
        %1298 = vst [vmem:[%s349 + $0x1c] sm:$0xf] %v1266
        %1299 = vst [vmem:[%s349 + $0x20] sm:$0xf] %v1267
        %1300 = vst [vmem:[%s349 + $0x24] sm:$0xf] %v1268
        %1301 = vst [vmem:[%s349 + $0x28] sm:$0xf] %v1269
        %1302 = vst [vmem:[%s349 + $0x2c] sm:$0xf] %v1270
        %1303 = vst [vmem:[%s349 + $0x30] sm:$0xf] %v1271
        %1304 = vst [vmem:[%s349 + $0x34] sm:$0xf] %v1272
        %1305 = vst [vmem:[%s349 + $0x38] sm:$0xf] %v1273
        %1306 = vst [vmem:[%s349 + $0x3c] sm:$0xf] %v1274
        %s1307 = smul.u32 16, %s21
        %p1308 = scmp.lt.s32.totalorder %s1307, 31
        %s1309 = scalar_select %p1308, %s1307, 31
        %s1310 = smul.addr %s1309, 4
        %s1311 = scalar_lea.vmem %s9, %s1310
        // Predicated region
        $region61: #{dqn_forward.1} parent=55 // pred_check
          %p1312 = pneg %p233
        $region62: #{dqn_forward.1} parent=55 // pred_check_branch
          %1314 = sbr.rel (%p1312) target = $region64
        $region63: #{dqn_forward.1} parent=55 // pred_region
          %s1315 = smul.u32 16, %s21
        $region64: #{dqn_forward.1} parent=55 // pred_fallthru
          _
      $region56: #{dqn_forward.1} parent=5 // pred_fallthru
        _
      %p1316 = scmp.le.s32.totalorder 2, %s16
      // Predicated region
      $region65: #{dqn_forward.1} parent=5 // pred_check
        %p1317 = pneg %p1316
      $region66: #{dqn_forward.1} parent=5 // pred_check_branch
        %1319 = sbr.rel (%p1317) target = $region68
      $region67: #{dqn_forward.1} parent=5 // pred_region
        %s1320 = ssub.s32 %s16, 2
        // Predicated region
        $region69: #{dqn_forward.1} parent=67 // pred_check
          %p1321 = pneg %p239
        $region70: #{dqn_forward.1} parent=67 // pred_check_branch
          %1323 = sbr.rel (%p1321) target = $region72
        $region71: #{dqn_forward.1} parent=67 // pred_region
          %s1324 = smul.u32 16, %s22
          %p1325 = scmp.lt.s32.totalorder %s1324, 31
          %s1326 = scalar_select %p1325, %s1324, 31
          %s1327 = smul.addr %s1326, 4
          %s1328 = scalar_lea.vmem %s9, %s1327
        $region72: #{dqn_forward.1} parent=67 // pred_fallthru
          _
      $region68: #{dqn_forward.1} parent=5 // pred_fallthru
        _
    $region6: #{dqn_forward.1} parent=1 // loop_footer
      %s20 = sadd.s32 1, %s16
    $region7: #{dqn_forward.1} parent=1 // loop_footer_branch
      %15 = sbr.rel target = $region3
    $region8: #{dqn_forward.1} parent=1 // loop_exit
      _
    %1329 = vsyncpa [#allocation3], 1
    %s1330 = scalar_lea.sflag [#allocation3], 1
    %1331 = vsyncpa %s1330, 1

</llo_original>
